<compile_context>
chip_gen: v5e
topology: v5e:2x2
jax: 0.10.0
libtpu: 0.0.40
codegen_flags: <defaults>
</compile_context>

<pallas_src>
import jax
import jax.numpy as jnp
from jax.experimental import pallas as pl
from jax.experimental.pallas import tpu as pltpu


# --------------------------------------------------------------------------
# Kernel
# --------------------------------------------------------------------------
def dam_kernel(x_ref, wp_ref, bp_ref, w1_ref, b1_ref, w2_ref, b2_ref,
               o_ref, gap_acc):
    """Grid: (batch tile i [parallel], spatial tile j [arbitrary/reduction]).

    x_ref:   (TB, C, TS)  streamed image chunk
    wp_ref:  (C, D)       backbone projection (mean scale pre-folded)
    w1_ref:  (D, HPAD)    Linear(D, D//2), hidden zero-padded to HPAD
    w2_ref:  (HPAD, OPAD) Linear(D//2, n_cls), rows/cols zero-padded
    o_ref:   (TB, OPAD)   lane-dense output block (resident across j)
    gap_acc: (TB, C)      f32 spatial-sum accumulator (VMEM scratch)
    """
    j = pl.program_id(1)

    @pl.when(j == 0)
    def _init():
        gap_acc[...] = jnp.zeros_like(gap_acc)

    # Stream the spatial sum; the 1/(H*W) mean scale is folded into wp.
    # Upcast to f32 so accumulation / elementwise math stays f32 even when x
    # arrives as bf16 (v5e-safe).
    x = x_ref[...].astype(jnp.float32)
    gap_acc[...] += jnp.sum(x, axis=-1)

    @pl.when(j == pl.num_programs(1) - 1)
    def _finalize():
        # TODO(synk): stand-in for the pretrained ResNet-50 backbone
        # (GAP + linear projection); K = C is tiny, this matmul is noise.
        feats = jnp.dot(gap_acc[...], wp_ref[...],
                        preferred_element_type=jnp.float32) + bp_ref[...]

        # self.layers: Linear -> Sigmoid -> Linear -> Sigmoid
        h = jax.nn.sigmoid(
            jnp.dot(feats, w1_ref[...],
                    preferred_element_type=jnp.float32) + b1_ref[...])
        y = jnp.dot(h, w2_ref[...],
                    preferred_element_type=jnp.float32) + b2_ref[...]
        o_ref[...] = jax.nn.sigmoid(y)


# --------------------------------------------------------------------------
# Wrapper
# --------------------------------------------------------------------------
def _round_up(n, m):
    return ((n + m - 1) // m) * m


def prepare_params(params, spatial_size):
    """One-time static weight preprocessing for the kernel:
       - fold the 1/(H*W) GAP mean scale into wp
       - zero-pad hidden (-> multiple of 128) and output (-> multiple of 128)
         so every in-kernel matmul / store is lane-dense.
    Padding is inert: padded hidden slots give sigmoid(0)=0.5 but multiply
    zero w2 rows; padded output columns are sliced off by the wrapper."""
    wp, bp, w1, b1, w2, b2 = params
    d, hidden = w1.shape
    out_dim = w2.shape[1]
    hpad = _round_up(hidden, 128)
    opad = _round_up(out_dim, 128)

    wp_s = (wp / float(spatial_size)).astype(jnp.float32)
    w1p = jnp.zeros((d, hpad), jnp.float32).at[:, :hidden].set(w1)
    b1p = jnp.zeros((1, hpad), jnp.float32).at[:, :hidden].set(b1)
    w2p = jnp.zeros((hpad, opad), jnp.float32).at[:hidden, :out_dim].set(w2)
    b2p = jnp.zeros((1, opad), jnp.float32).at[:, :out_dim].set(b2)
    return (wp_s, bp.astype(jnp.float32), w1p, b1p, w2p, b2p), out_dim


def dam_sequential_forward(x_nchw, prepared, *, batch_tile=32,
                           max_spatial_tile=2048, x_dtype=None):
    """x_nchw: [B, C, H, W]. Returns [B, output_dim] float32.

    batch_tile is sized so a double-buffered x tile fits VMEM on every
    generation (v7x at 64 MiB is the tightest); x_dtype=jnp.bfloat16 halves
    x HBM traffic (recommended on v6e/v7x)."""
    params, out_dim = prepared
    wp, bp, w1, b1, w2, b2 = params
    B, C, H, W = x_nchw.shape
    S = H * W
    D = wp.shape[1]
    HPAD = w1.shape[1]
    OPAD = w2.shape[1]

    x = x_nchw.reshape(B, C, S)            # flatten spatial onto lane axis
    if x_dtype is not None:
        x = x.astype(x_dtype)

    # Batch tile: full batch when small, otherwise a sublane-aligned tile.
    if B <= batch_tile:
        TB = B
    else:
        TB = batch_tile
        assert TB % 8 == 0 and B % TB == 0, "batch must tile evenly"

    # Spatial tile: largest multiple of 128 that divides S (streams the GAP,
    # keeps DMAs lane-dense); fall back to the full extent otherwise.
    if S % 128 == 0 and S > 128:
        TS = 128
        cap = max(128, max_spatial_tile - (max_spatial_tile % 128))
        for cand in range(cap, 127, -128):
            if S % cand == 0:
                TS = cand
                break
    else:
        TS = S

    grid = (B // TB, S // TS)
    const2 = lambda i, j: (0, 0)

    out_padded = pl.pallas_call(
        dam_kernel,
        out_shape=jax.ShapeDtypeStruct((B, OPAD), jnp.float32),
        grid=grid,
        in_specs=[
            pl.BlockSpec((TB, C, TS), lambda i, j: (i, 0, j)),  # x (streamed)
            pl.BlockSpec((C, D), const2),        # wp  (resident)
            pl.BlockSpec((1, D), const2),        # bp
            pl.BlockSpec((D, HPAD), const2),     # w1
            pl.BlockSpec((1, HPAD), const2),     # b1
            pl.BlockSpec((HPAD, OPAD), const2),  # w2
            pl.BlockSpec((1, OPAD), const2),     # b2
        ],
        out_specs=pl.BlockSpec((TB, OPAD), lambda i, j: (i, 0)),
        scratch_shapes=[pltpu.VMEM((TB, C), jnp.float32)],
        compiler_params=pltpu.CompilerParams(
            dimension_semantics=("parallel", "arbitrary")),
    )(x, wp, bp, w1, b1, w2, b2)

    return out_padded[:, :out_dim]


# --------------------------------------------------------------------------
# Params / reference
# --------------------------------------------------------------------------
def init_params(key, in_channels, input_dim, output_dim):
    """PyTorch-Linear-style uniform(+-1/sqrt(fan_in)) init matching shapes."""
    hidden = int(input_dim * 0.5)
    ks = jax.random.split(key, 6)

    def lin(kw, kb, fan_in, fan_out):
        bound = 1.0 / jnp.sqrt(float(fan_in))
        w = jax.random.uniform(kw, (fan_in, fan_out), jnp.float32, -bound, bound)
        b = jax.random.uniform(kb, (1, fan_out), jnp.float32, -bound, bound)
        return w, b

    wp, bp = lin(ks[0], ks[1], in_channels, input_dim)   # stand-in backbone proj
    w1, b1 = lin(ks[2], ks[3], input_dim, hidden)        # nn.Linear(D, D//2)
    w2, b2 = lin(ks[4], ks[5], hidden, output_dim)       # nn.Linear(D//2, n_cls)
    return wp, bp, w1, b1, w2, b2


def reference_forward(x_nchw, params):
    """Pure-JAX reference of the same computation (sanity check)."""
    wp, bp, w1, b1, w2, b2 = params
    B, C, H, W = x_nchw.shape
    gap = jnp.mean(x_nchw.reshape(B, C, H * W), axis=-1)
    feats = gap @ wp + bp
    h = jax.nn.sigmoid(feats @ w1 + b1)
    return jax.nn.sigmoid(h @ w2 + b2)


# --------------------------------------------------------------------------
if __name__ == "__main__":
    B, C, H, W = 2, 4, 16, 16        # small image batch (NCHW)
    input_dim, output_dim = 128, 10  # module defaults

    key = jax.random.PRNGKey(0)
    k_x, k_p = jax.random.split(key)
    x = jax.random.normal(k_x, (B, C, H, W), jnp.float32)
    raw_params = init_params(k_p, C, input_dim, output_dim)
    prepared = prepare_params(raw_params, H * W)

    # f32 run; max_spatial_tile=128 forces 2 spatial grid steps so the
    # streamed-GAP accumulation path is exercised.
    out = dam_sequential_forward(x, prepared, max_spatial_tile=128)
    out = jax.block_until_ready(out)
    ref = reference_forward(x, raw_params)
    assert out.shape == (B, output_dim)
    assert jnp.allclose(out, ref, atol=1e-5, rtol=1e-5)

    # bf16-input run (halves x HBM traffic on v6e/v7x; kernel math stays f32).
    out_bf16 = dam_sequential_forward(x, prepared, max_spatial_tile=128,
                                      x_dtype=jnp.bfloat16)
    out_bf16 = jax.block_until_ready(out_bf16)
    ref_bf16 = reference_forward(
        x.astype(jnp.bfloat16).astype(jnp.float32), raw_params)
    assert jnp.allclose(out_bf16, ref_bf16, atol=1e-3, rtol=1e-3)

    print("KERNEL_OK")
</pallas_src>

<mosaic_0001>
module attributes {stable_mosaic.version = 11 : i64} {
  func.func @dam_kernel(%arg0: i32, %arg1: i32, %arg2: memref<2x4x128xf32, #tpu.memory_space<vmem>>, %arg3: memref<4x128xf32, #tpu.memory_space<vmem>>, %arg4: memref<1x128xf32, #tpu.memory_space<vmem>>, %arg5: memref<128x128xf32, #tpu.memory_space<vmem>>, %arg6: memref<1x128xf32, #tpu.memory_space<vmem>>, %arg7: memref<128x128xf32, #tpu.memory_space<vmem>>, %arg8: memref<1x128xf32, #tpu.memory_space<vmem>>, %arg9: memref<2x128xf32, #tpu.memory_space<vmem>>, %arg10: memref<2x4xf32, #tpu.memory_space<vmem>>) attributes {dimension_semantics = [#tpu.dimension_semantics<parallel>, #tpu.dimension_semantics<arbitrary>], iteration_bounds = array<i64: 1, 2>, scalar_prefetch = 0 : i64, scratch_operands = 1 : i64, tpu.core_type = #tpu.core_type<tc>, window_params = [{transform_indices = @transform_0, window_bounds = array<i64: 2, 4, 128>}, {pipeline_mode = #tpu.pipeline_mode<synchronous>, transform_indices = @transform_1, window_bounds = array<i64: 4, 128>}, {pipeline_mode = #tpu.pipeline_mode<synchronous>, transform_indices = @transform_2, window_bounds = array<i64: 1, 128>}, {pipeline_mode = #tpu.pipeline_mode<synchronous>, transform_indices = @transform_3, window_bounds = array<i64: 128, 128>}, {pipeline_mode = #tpu.pipeline_mode<synchronous>, transform_indices = @transform_4, window_bounds = array<i64: 1, 128>}, {pipeline_mode = #tpu.pipeline_mode<synchronous>, transform_indices = @transform_5, window_bounds = array<i64: 128, 128>}, {pipeline_mode = #tpu.pipeline_mode<synchronous>, transform_indices = @transform_6, window_bounds = array<i64: 1, 128>}, {transform_indices = @transform_7, window_bounds = array<i64: 2, 128>}]} {
    %c0_i32 = arith.constant 0 : i32
    %0 = arith.cmpi eq, %arg1, %c0_i32 : i32
    %1 = arith.extui %0 : i1 to i32
    %c0_i32_0 = arith.constant 0 : i32
    %2 = arith.cmpi ne, %1, %c0_i32_0 : i32
    scf.if %2 {
      %cst_8 = arith.constant 0.000000e+00 : f32
      %11 = vector.broadcast %cst_8 : f32 to vector<2x4xf32>
      %c0_9 = arith.constant 0 : index
      %c0_10 = arith.constant 0 : index
      %12 = vector.load %arg10[%c0_9, %c0_10] : memref<2x4xf32, #tpu.memory_space<vmem>>, vector<2x4xf32>
      tpu.vector_store %arg10[%c0_9, %c0_10], %11 {strides = array<i32>} : memref<2x4xf32, #tpu.memory_space<vmem>>, vector<2x4xf32>,
    } else {
    }
    %c0 = arith.constant 0 : index
    %c0_1 = arith.constant 0 : index
    %c0_2 = arith.constant 0 : index
    %3 = vector.load %arg2[%c0, %c0_1, %c0_2] : memref<2x4x128xf32, #tpu.memory_space<vmem>>, vector<2x4x128xf32>
    %c0_3 = arith.constant 0 : index
    %c0_4 = arith.constant 0 : index
    %4 = vector.load %arg10[%c0_3, %c0_4] : memref<2x4xf32, #tpu.memory_space<vmem>>, vector<2x4xf32>
    %cst = arith.constant dense<0.000000e+00> : vector<2x4xf32>
    %5 = vector.multi_reduction <add>, %3, %cst [2] : vector<2x4x128xf32> to vector<2x4xf32>
    %6 = arith.addf %4, %5 : vector<2x4xf32>
    %c0_5 = arith.constant 0 : index
    %c0_6 = arith.constant 0 : index
    %7 = vector.load %arg10[%c0_5, %c0_6] : memref<2x4xf32, #tpu.memory_space<vmem>>, vector<2x4xf32>
    tpu.vector_store %arg10[%c0_5, %c0_6], %6 {strides = array<i32>} : memref<2x4xf32, #tpu.memory_space<vmem>>, vector<2x4xf32>,
    %c1_i32 = arith.constant 1 : i32
    %8 = arith.cmpi eq, %arg1, %c1_i32 : i32
    %9 = arith.extui %8 : i1 to i32
    %c0_i32_7 = arith.constant 0 : i32
    %10 = arith.cmpi ne, %9, %c0_i32_7 : i32
    scf.if %10 {
      %c0_8 = arith.constant 0 : index
      %c0_9 = arith.constant 0 : index
      %11 = vector.load %arg10[%c0_8, %c0_9] : memref<2x4xf32, #tpu.memory_space<vmem>>, vector<2x4xf32>
      %c0_10 = arith.constant 0 : index
      %c0_11 = arith.constant 0 : index
      %12 = vector.load %arg3[%c0_10, %c0_11] : memref<4x128xf32, #tpu.memory_space<vmem>>, vector<4x128xf32>
      %cst_12 = arith.constant dense<0.000000e+00> : vector<2x128xf32>
      %13 = tpu.matmul %11, %12, %cst_12 {dimension_numbers = #tpu.dot_dimension_numbers<[1], [0], [0], [1], [0, 0, 1, 1], [], []>} : vector<2x4xf32>, vector<4x128xf32>, vector<2x128xf32> -> vector<2x128xf32>
      %c0_13 = arith.constant 0 : index
      %c0_14 = arith.constant 0 : index
      %14 = vector.load %arg4[%c0_13, %c0_14] : memref<1x128xf32, #tpu.memory_space<vmem>>, vector<1x128xf32>
      %15 = vector.broadcast %14 : vector<1x128xf32> to vector<2x128xf32>
      %16 = arith.addf %13, %15 : vector<2x128xf32>
      %c0_15 = arith.constant 0 : index
      %c0_16 = arith.constant 0 : index
      %17 = vector.load %arg5[%c0_15, %c0_16] : memref<128x128xf32, #tpu.memory_space<vmem>>, vector<128x128xf32>
      %cst_17 = arith.constant dense<0.000000e+00> : vector<2x128xf32>
      %18 = tpu.matmul %16, %17, %cst_17 {dimension_numbers = #tpu.dot_dimension_numbers<[1], [0], [0], [1], [0, 0, 1, 1], [], []>} : vector<2x128xf32>, vector<128x128xf32>, vector<2x128xf32> -> vector<2x128xf32>
      %c0_18 = arith.constant 0 : index
      %c0_19 = arith.constant 0 : index
      %19 = vector.load %arg6[%c0_18, %c0_19] : memref<1x128xf32, #tpu.memory_space<vmem>>, vector<1x128xf32>
      %20 = vector.broadcast %19 : vector<1x128xf32> to vector<2x128xf32>
      %21 = arith.addf %18, %20 : vector<2x128xf32>
      %22 = arith.negf %21 : vector<2x128xf32>
      %23 = math.exp %22 : vector<2x128xf32>
      %cst_20 = arith.constant 1.000000e+00 : f32
      %24 = vector.broadcast %cst_20 : f32 to vector<2x128xf32>
      %25 = arith.addf %24, %23 : vector<2x128xf32>
      %26 = arith.divf %24, %25 : vector<2x128xf32>
      %c0_21 = arith.constant 0 : index
      %c0_22 = arith.constant 0 : index
      %27 = vector.load %arg7[%c0_21, %c0_22] : memref<128x128xf32, #tpu.memory_space<vmem>>, vector<128x128xf32>
      %cst_23 = arith.constant dense<0.000000e+00> : vector<2x128xf32>
      %28 = tpu.matmul %26, %27, %cst_23 {dimension_numbers = #tpu.dot_dimension_numbers<[1], [0], [0], [1], [0, 0, 1, 1], [], []>} : vector<2x128xf32>, vector<128x128xf32>, vector<2x128xf32> -> vector<2x128xf32>
      %c0_24 = arith.constant 0 : index
      %c0_25 = arith.constant 0 : index
      %29 = vector.load %arg8[%c0_24, %c0_25] : memref<1x128xf32, #tpu.memory_space<vmem>>, vector<1x128xf32>
      %30 = vector.broadcast %29 : vector<1x128xf32> to vector<2x128xf32>
      %31 = arith.addf %28, %30 : vector<2x128xf32>
      %32 = arith.negf %31 : vector<2x128xf32>
      %33 = math.exp %32 : vector<2x128xf32>
      %cst_26 = arith.constant 1.000000e+00 : f32
      %34 = vector.broadcast %cst_26 : f32 to vector<2x128xf32>
      %35 = arith.addf %34, %33 : vector<2x128xf32>
      %36 = arith.divf %34, %35 : vector<2x128xf32>
      %c0_27 = arith.constant 0 : index
      %c0_28 = arith.constant 0 : index
      %37 = vector.load %arg9[%c0_27, %c0_28] : memref<2x128xf32, #tpu.memory_space<vmem>>, vector<2x128xf32>
      tpu.vector_store %arg9[%c0_27, %c0_28], %36 {strides = array<i32>} : memref<2x128xf32, #tpu.memory_space<vmem>>, vector<2x128xf32>,
    } else {
    }
    return
  }
  func.func @transform_0(%arg0: i32, %arg1: i32) -> (i32, i32, i32) {
    %c0_i32 = arith.constant 0 : i32
    %c0_i32_0 = arith.constant 0 : i32
    return %arg0, %c0_i32, %arg1 : i32, i32, i32
  }
  func.func @transform_1(%arg0: i32, %arg1: i32) -> (i32, i32) {
    %c0_i32 = arith.constant 0 : i32
    %c0_i32_0 = arith.constant 0 : i32
    %c0_i32_1 = arith.constant 0 : i32
    return %c0_i32, %c0_i32_0 : i32, i32
  }
  func.func @transform_2(%arg0: i32, %arg1: i32) -> (i32, i32) {
    %c0_i32 = arith.constant 0 : i32
    %c0_i32_0 = arith.constant 0 : i32
    %c0_i32_1 = arith.constant 0 : i32
    return %c0_i32, %c0_i32_0 : i32, i32
  }
  func.func @transform_3(%arg0: i32, %arg1: i32) -> (i32, i32) {
    %c0_i32 = arith.constant 0 : i32
    %c0_i32_0 = arith.constant 0 : i32
    %c0_i32_1 = arith.constant 0 : i32
    return %c0_i32, %c0_i32_0 : i32, i32
  }
  func.func @transform_4(%arg0: i32, %arg1: i32) -> (i32, i32) {
    %c0_i32 = arith.constant 0 : i32
    %c0_i32_0 = arith.constant 0 : i32
    %c0_i32_1 = arith.constant 0 : i32
    return %c0_i32, %c0_i32_0 : i32, i32
  }
  func.func @transform_5(%arg0: i32, %arg1: i32) -> (i32, i32) {
    %c0_i32 = arith.constant 0 : i32
    %c0_i32_0 = arith.constant 0 : i32
    %c0_i32_1 = arith.constant 0 : i32
    return %c0_i32, %c0_i32_0 : i32, i32
  }
  func.func @transform_6(%arg0: i32, %arg1: i32) -> (i32, i32) {
    %c0_i32 = arith.constant 0 : i32
    %c0_i32_0 = arith.constant 0 : i32
    %c0_i32_1 = arith.constant 0 : i32
    return %c0_i32, %c0_i32_0 : i32, i32
  }
  func.func @transform_7(%arg0: i32, %arg1: i32) -> (i32, i32) {
    %c0_i32 = arith.constant 0 : i32
    %c0_i32_0 = arith.constant 0 : i32
    return %arg0, %c0_i32 : i32, i32
  }
}

</mosaic_0001>

<llo_original>
// kernel: tpu_custom_call.1
$region0: #{tpu_custom_call.1}
  #allocation0 [shape = 'u32[]', space=smem, size = 0x4, offset = 0x4, fixed_abs, tag = 'smem constant byte address 0x4 - core index']
  #allocation1 [shape = 'u32[72,128]{1,0:T(1,128)}', space=vmem, size = 0x9000, scoped, tag = 'internal scratch']
  #allocation2 [shape = 'f32[2,4]{1,0:T(2,128)}', space=vmem, size = 0x400, scoped, tag = 'scratch operand']
  %s0 = inlined_call_operand.hbm [shape: f32[2,4,256], index: 0, kind: input, shape index: {}]
  %s1 = inlined_call_operand.hbm [shape: f32[4,128], index: 1, kind: input, shape index: {}]
  %s2 = inlined_call_operand.vmem [shape: f32[1,128], index: 2, kind: input, shape index: {}]
  %s3 = inlined_call_operand.hbm [shape: f32[128,128], index: 3, kind: input, shape index: {}]
  %s4 = inlined_call_operand.vmem [shape: f32[1,128], index: 4, kind: input, shape index: {}]
  %s5 = inlined_call_operand.hbm [shape: f32[128,128], index: 5, kind: input, shape index: {}]
  %s6 = inlined_call_operand.vmem [shape: f32[1,128], index: 6, kind: input, shape index: {}]
  %s7 = inlined_call_operand.hbm [shape: f32[2,128], index: 7, kind: output, shape index: {}]
  %s8 = sld [smem:[#allocation0]]
  $region85: #{tpu_custom_call.1} parent=0
    _
  %s10 = ssub.s32 1, %s8
  %s11 = scalar_select 0, %s10, %s8
  $region1: #{tpu_custom_call.1} parent=0
    #allocation3 [shape = 'u8[8192]{0}', space=vmem, size = 0x2000, scoped, tag = 'input window, operand 0']
    #allocation4 [shape = 's32[2]{0}', space=sflag, size = 0x8, scoped, tag = 'scoped memory for tpu_custom_call.1']
    #allocation5 [shape = 's32[2]{0}', space=sflag, size = 0x8, scoped, tag = 'scoped memory for tpu_custom_call.1']
    #allocation6 [shape = 'u8[2048]{0}', space=vmem, size = 0x800, scoped, tag = 'input window, operand 1, single buffered']
    #allocation7 [shape = 's32[1]{0}', space=sflag, size = 0x4, scoped, tag = 'scoped memory for tpu_custom_call.1']
    #allocation8 [shape = 'u8[65536]{0}', space=vmem, size = 0x10000, scoped, tag = 'input window, operand 3, single buffered']
    #allocation9 [shape = 'u8[65536]{0}', space=vmem, size = 0x10000, scoped, tag = 'input window, operand 5, single buffered']
    #allocation10 [shape = 's32[1]{0}', space=sflag, size = 0x4, scoped, tag = 'scoped memory for tpu_custom_call.1']
    #allocation11 [shape = 'u8[1024]{0}', space=vmem, size = 0x400, scoped, tag = 'output window, operand 0, single buffered']
    %12 = vsyncpa [#allocation4], 0
    %s13 = scalar_lea.sflag [#allocation4], 1
    %14 = vsyncpa %s13, 0
    %15 = vsyncpa [#allocation7], 0
    %16 = vsyncpa [#allocation10], 0
    %17 = vsyncpa [#allocation5], 0
    loop: start=0, step=1, limit=4
    $region2: #{tpu_custom_call.1} parent=1 // loop_pre_header
      _
    $region3: #{tpu_custom_call.1} parent=1 // loop_header
      %s19 = sphi 0, %s23
      %p20 = scmp.ge.s32.totalorder %s19, 4
      %s26 = sphi 0, %s38
      %s27 = sphi 0, %s34
      %s28 = sphi 0, %s26
      %s29 = sphi 0, %s27
      %s30 = sphi 0, %s28
      %s31 = sphi 0, %s29
      %s43 = sphi 0, %s45
      %s46 = sphi 0, %s43
      %s47 = sphi 0, %s46
      %s63 = sphi 0, %s47
      %s67 = sphi 0, %s67
      %s69 = sphi 0, %s67
      %s70 = sphi 0, %s69
      %s84 = sphi 0, %s70
      %s88 = sphi 0, %s88
      %s90 = sphi 0, %s88
      %s91 = sphi 0, %s90
      %s105 = sphi 0, %s91
      %s109 = sphi 0, %s109
      %s111 = sphi 0, %s109
      %s112 = sphi 0, %s111
      %s126 = sphi 0, %s112
      %s130 = sphi 0, %s130
      %s132 = sphi 0, %s130
      %s133 = sphi 0, %s132
      %s147 = sphi 0, %s133
      %s151 = sphi 0, %s151
      %s153 = sphi 0, %s151
      %s154 = sphi 0, %s153
      %s168 = sphi 0, %s154
      %s172 = sphi 0, %s172
      %s174 = sphi 0, %s172
      %s175 = sphi 0, %s174
      %s189 = sphi 0, %s175
      %s195 = sphi 0, %s197
      %s198 = sphi 0, %s195
      %s199 = sphi 0, %s198
      %s215 = sphi 0, %s199
    $region4: #{tpu_custom_call.1} parent=1 // loop_header_branch
      %22 = sbr.rel (%p20) target = $region8
    $region5: #{tpu_custom_call.1} parent=1 // loop_body
      %s24 = ssub.s32 %s19, 1
      %s25 = ssub.s32 %s19, 2
      %s32 = sadd.s32 1, %s27
      %p33 = scmp.ge.s32.totalorder %s32, 2
      %s34 = scalar_select %p33, 0, %s32
      %s35 = sadd.s32 1, %s26
      %s36 = scalar_select %p33, %s35, %s26
      %p37 = scmp.ge.s32.totalorder %s36, 1
      %s38 = scalar_select %p37, 0, %s36
      %s39 = ssub.s32 %s26, %s38
      %s40 = ssub.s32 %s27, %s34
      %s41 = sor.u32 %s39, %s40
      %p42 = scmp.eq.s32.totalorder %s41, 0
      %s44 = sadd.s32 %s43, 1
      %s45 = scalar_select %p42, %s43, %s44
      %p48 = pneg %p42
      %p49 = scmp.eq.s32.totalorder %s19, 1
      %p50 = por %p48, %p49
      %p51 = scmp.ne.s32.totalorder %s43, %s46
      %p52 = scmp.eq.s32.totalorder %s19, 0
      %p53 = por %p51, %p52
      %p54 = scmp.ne.s32.totalorder %s43, %s46
      %p55 = scmp.eq.s32.totalorder %s24, 1
      %p56 = por %p54, %p55
      %p57 = scmp.ne.s32.totalorder %s46, %s47
      %p58 = scmp.eq.s32.totalorder %s24, 0
      %p59 = por %p57, %p58
      %p60 = scmp.ne.s32.totalorder %s46, %s47
      %p61 = scmp.eq.s32.totalorder %s25, 1
      %p62 = por %p60, %p61
      %p64 = scmp.ne.s32.totalorder %s47, %s63
      %p65 = scmp.eq.s32.totalorder %s25, 0
      %p66 = por %p64, %p65
      %s68 = sadd.s32 %s67, 1
      %p71 = scmp.eq.s32.totalorder %s19, 1
      %p72 = scmp.ne.s32.totalorder %s67, %s69
      %p73 = scmp.eq.s32.totalorder %s19, 0
      %p74 = por %p72, %p73
      %p75 = scmp.ne.s32.totalorder %s67, %s69
      %p76 = scmp.eq.s32.totalorder %s24, 1
      %p77 = por %p75, %p76
      %p78 = scmp.ne.s32.totalorder %s69, %s70
      %p79 = scmp.eq.s32.totalorder %s24, 0
      %p80 = por %p78, %p79
      %p81 = scmp.ne.s32.totalorder %s69, %s70
      %p82 = scmp.eq.s32.totalorder %s25, 1
      %p83 = por %p81, %p82
      %p85 = scmp.ne.s32.totalorder %s70, %s84
      %p86 = scmp.eq.s32.totalorder %s25, 0
      %p87 = por %p85, %p86
      %s89 = sadd.s32 %s88, 1
      %p92 = scmp.eq.s32.totalorder %s19, 1
      %p93 = scmp.ne.s32.totalorder %s88, %s90
      %p94 = scmp.eq.s32.totalorder %s19, 0
      %p95 = por %p93, %p94
      %p96 = scmp.ne.s32.totalorder %s88, %s90
      %p97 = scmp.eq.s32.totalorder %s24, 1
      %p98 = por %p96, %p97
      %p99 = scmp.ne.s32.totalorder %s90, %s91
      %p100 = scmp.eq.s32.totalorder %s24, 0
      %p101 = por %p99, %p100
      %p102 = scmp.ne.s32.totalorder %s90, %s91
      %p103 = scmp.eq.s32.totalorder %s25, 1
      %p104 = por %p102, %p103
      %p106 = scmp.ne.s32.totalorder %s91, %s105
      %p107 = scmp.eq.s32.totalorder %s25, 0
      %p108 = por %p106, %p107
      %s110 = sadd.s32 %s109, 1
      %p113 = scmp.eq.s32.totalorder %s19, 1
      %p114 = scmp.ne.s32.totalorder %s109, %s111
      %p115 = scmp.eq.s32.totalorder %s19, 0
      %p116 = por %p114, %p115
      %p117 = scmp.ne.s32.totalorder %s109, %s111
      %p118 = scmp.eq.s32.totalorder %s24, 1
      %p119 = por %p117, %p118
      %p120 = scmp.ne.s32.totalorder %s111, %s112
      %p121 = scmp.eq.s32.totalorder %s24, 0
      %p122 = por %p120, %p121
      %p123 = scmp.ne.s32.totalorder %s111, %s112
      %p124 = scmp.eq.s32.totalorder %s25, 1
      %p125 = por %p123, %p124
      %p127 = scmp.ne.s32.totalorder %s112, %s126
      %p128 = scmp.eq.s32.totalorder %s25, 0
      %p129 = por %p127, %p128
      %s131 = sadd.s32 %s130, 1
      %p134 = scmp.eq.s32.totalorder %s19, 1
      %p135 = scmp.ne.s32.totalorder %s130, %s132
      %p136 = scmp.eq.s32.totalorder %s19, 0
      %p137 = por %p135, %p136
      %p138 = scmp.ne.s32.totalorder %s130, %s132
      %p139 = scmp.eq.s32.totalorder %s24, 1
      %p140 = por %p138, %p139
      %p141 = scmp.ne.s32.totalorder %s132, %s133
      %p142 = scmp.eq.s32.totalorder %s24, 0
      %p143 = por %p141, %p142
      %p144 = scmp.ne.s32.totalorder %s132, %s133
      %p145 = scmp.eq.s32.totalorder %s25, 1
      %p146 = por %p144, %p145
      %p148 = scmp.ne.s32.totalorder %s133, %s147
      %p149 = scmp.eq.s32.totalorder %s25, 0
      %p150 = por %p148, %p149
      %s152 = sadd.s32 %s151, 1
      %p155 = scmp.eq.s32.totalorder %s19, 1
      %p156 = scmp.ne.s32.totalorder %s151, %s153
      %p157 = scmp.eq.s32.totalorder %s19, 0
      %p158 = por %p156, %p157
      %p159 = scmp.ne.s32.totalorder %s151, %s153
      %p160 = scmp.eq.s32.totalorder %s24, 1
      %p161 = por %p159, %p160
      %p162 = scmp.ne.s32.totalorder %s153, %s154
      %p163 = scmp.eq.s32.totalorder %s24, 0
      %p164 = por %p162, %p163
      %p165 = scmp.ne.s32.totalorder %s153, %s154
      %p166 = scmp.eq.s32.totalorder %s25, 1
      %p167 = por %p165, %p166
      %p169 = scmp.ne.s32.totalorder %s154, %s168
      %p170 = scmp.eq.s32.totalorder %s25, 0
      %p171 = por %p169, %p170
      %s173 = sadd.s32 %s172, 1
      %p176 = scmp.eq.s32.totalorder %s19, 1
      %p177 = scmp.ne.s32.totalorder %s172, %s174
      %p178 = scmp.eq.s32.totalorder %s19, 0
      %p179 = por %p177, %p178
      %p180 = scmp.ne.s32.totalorder %s172, %s174
      %p181 = scmp.eq.s32.totalorder %s24, 1
      %p182 = por %p180, %p181
      %p183 = scmp.ne.s32.totalorder %s174, %s175
      %p184 = scmp.eq.s32.totalorder %s24, 0
      %p185 = por %p183, %p184
      %p186 = scmp.ne.s32.totalorder %s174, %s175
      %p187 = scmp.eq.s32.totalorder %s25, 1
      %p188 = por %p186, %p187
      %p190 = scmp.ne.s32.totalorder %s175, %s189
      %p191 = scmp.eq.s32.totalorder %s25, 0
      %p192 = por %p190, %p191
      %s193 = ssub.s32 %s26, %s38
      %p194 = scmp.eq.s32.totalorder %s193, 0
      %s196 = sadd.s32 %s195, 1
      %s197 = scalar_select %p194, %s195, %s196
      %p200 = pneg %p194
      %p201 = scmp.eq.s32.totalorder %s19, 1
      %p202 = por %p200, %p201
      %p203 = scmp.ne.s32.totalorder %s195, %s198
      %p204 = scmp.eq.s32.totalorder %s19, 0
      %p205 = por %p203, %p204
      %p206 = scmp.ne.s32.totalorder %s195, %s198
      %p207 = scmp.eq.s32.totalorder %s24, 1
      %p208 = por %p206, %p207
      %p209 = scmp.ne.s32.totalorder %s198, %s199
      %p210 = scmp.eq.s32.totalorder %s24, 0
      %p211 = por %p209, %p210
      %p212 = scmp.ne.s32.totalorder %s198, %s199
      %p213 = scmp.eq.s32.totalorder %s25, 1
      %p214 = por %p212, %p213
      %p216 = scmp.ne.s32.totalorder %s199, %s215
      %p217 = scmp.eq.s32.totalorder %s25, 0
      %p218 = por %p216, %p217
      %p219 = scmp.le.s32.totalorder 1, %s19
      %p220 = scmp.lt.s32.totalorder %s19, 3
      %p221 = pnand %p219, %p220
      %p222 = pneg %p221
      // Predicated region
      $region9: #{tpu_custom_call.1} parent=5 // pred_check
        _
      $region10: #{tpu_custom_call.1} parent=5 // pred_check_branch
        %224 = sbr.rel (%p221) target = $region12
      $region11: #{tpu_custom_call.1} parent=5 // pred_region
        %s225 = ssub.s32 %s19, 1
        // Predicated region
        $region13: #{tpu_custom_call.1} parent=11 // pred_check
          %p226 = pneg %p80
        $region14: #{tpu_custom_call.1} parent=11 // pred_check_branch
          %228 = sbr.rel (%p226) target = $region16
        $region15: #{tpu_custom_call.1} parent=11 // pred_region
          %230 = vsyncadd [#allocation7], 0
          %s232 = sshll.u32 %s1, 4
          %s233 = int_to_ptr.hbm [resolvable:$true] %s232
          %s234 = sshll.u32 [#allocation6], 4
          %s235 = int_to_ptr.vmem [resolvable:$true] %s234
          %237 = dma.hbm_to_vmem [thread:$0]  %s233, 64, %s235, [#allocation7]
        $region16: #{tpu_custom_call.1} parent=11 // pred_fallthru
          _
        // Predicated region
        $region17: #{tpu_custom_call.1} parent=11 // pred_check
          %p238 = pneg %p101
        $region18: #{tpu_custom_call.1} parent=11 // pred_check_branch
          %240 = sbr.rel (%p238) target = $region20
        $region19: #{tpu_custom_call.1} parent=11 // pred_region
          _
        $region20: #{tpu_custom_call.1} parent=11 // pred_fallthru
          _
        // Predicated region
        $region21: #{tpu_custom_call.1} parent=11 // pred_check
          %p241 = pneg %p122
        $region22: #{tpu_custom_call.1} parent=11 // pred_check_branch
          %243 = sbr.rel (%p241) target = $region24
        $region23: #{tpu_custom_call.1} parent=11 // pred_region
          %245 = vsyncadd [#allocation7], 0
          %s246 = sshll.u32 %s3, 4
          %s247 = int_to_ptr.hbm [resolvable:$true] %s246
          %s248 = sshll.u32 [#allocation8], 4
          %s249 = int_to_ptr.vmem [resolvable:$true] %s248
          %254 = dma.hbm_to_vmem [thread:$0]  %s247, 2048, %s249, [#allocation7], 128, 128, 8
        $region24: #{tpu_custom_call.1} parent=11 // pred_fallthru
          _
        // Predicated region
        $region25: #{tpu_custom_call.1} parent=11 // pred_check
          %p255 = pneg %p143
        $region26: #{tpu_custom_call.1} parent=11 // pred_check_branch
          %257 = sbr.rel (%p255) target = $region28
        $region27: #{tpu_custom_call.1} parent=11 // pred_region
          _
        $region28: #{tpu_custom_call.1} parent=11 // pred_fallthru
          _
        // Predicated region
        $region29: #{tpu_custom_call.1} parent=11 // pred_check
          %p258 = pneg %p164
        $region30: #{tpu_custom_call.1} parent=11 // pred_check_branch
          %260 = sbr.rel (%p258) target = $region32
        $region31: #{tpu_custom_call.1} parent=11 // pred_region
          %262 = vsyncadd [#allocation10], 0
          %s263 = sshll.u32 %s5, 4
          %s264 = int_to_ptr.hbm [resolvable:$true] %s263
          %s265 = sshll.u32 [#allocation9], 4
          %s266 = int_to_ptr.vmem [resolvable:$true] %s265
          %271 = dma.hbm_to_vmem [thread:$0]  %s264, 2048, %s266, [#allocation10], 128, 128, 8
        $region32: #{tpu_custom_call.1} parent=11 // pred_fallthru
          _
        // Predicated region
        $region33: #{tpu_custom_call.1} parent=11 // pred_check
          %p272 = pneg %p185
        $region34: #{tpu_custom_call.1} parent=11 // pred_check_branch
          %274 = sbr.rel (%p272) target = $region36
        $region35: #{tpu_custom_call.1} parent=11 // pred_region
          _
        $region36: #{tpu_custom_call.1} parent=11 // pred_fallthru
          _
      $region12: #{tpu_custom_call.1} parent=5 // pred_fallthru
        _
      %p275 = scmp.lt.s32.totalorder %s19, 2
      // Predicated region
      $region37: #{tpu_custom_call.1} parent=5 // pred_check
        %p276 = pneg %p275
      $region38: #{tpu_custom_call.1} parent=5 // pred_check_branch
        %278 = sbr.rel (%p276) target = $region40
      $region39: #{tpu_custom_call.1} parent=5 // pred_region
        // Predicated region
        $region41: #{tpu_custom_call.1} parent=39 // pred_check
          %p279 = pneg %p53
        $region42: #{tpu_custom_call.1} parent=39 // pred_check_branch
          %281 = sbr.rel (%p279) target = $region44
        $region43: #{tpu_custom_call.1} parent=39 // pred_region
          %s282 = sand.u32 %s43, 1
          %s283 = scalar_lea.sflag [#allocation4], %s282
          %s284 = sand.u32 %s43, 1
          %s285 = smul.addr %s284, 8
          %s286 = scalar_lea.vmem [#allocation3], %s285
          %s287 = smul.u32 2, %s26
          %289 = vsyncadd %s283, 0
          %s290 = smul.addr %s287, 2
          %s291 = sadd.s32 %s27, %s290
          %s292 = smul.addr %s291, 4
          %s293 = scalar_lea.hbm %s0, %s292
          %s294 = sshll.u32 %s293, 4
          %s295 = int_to_ptr.hbm [resolvable:$true] %s294
          %s296 = sshll.u32 %s286, 4
          %s297 = int_to_ptr.vmem [resolvable:$true] %s296
          %302 = dma.hbm_to_vmem [thread:$0]  %s295, 128, %s297, %s283, 128, 64, 4
        $region44: #{tpu_custom_call.1} parent=39 // pred_fallthru
          _
      $region40: #{tpu_custom_call.1} parent=5 // pred_fallthru
        _
      %p303 = scmp.le.s32.totalorder 1, %s19
      %p304 = scmp.lt.s32.totalorder %s19, 3
      %p305 = pnand %p303, %p304
      %p306 = pneg %p305
      // Predicated region
      $region45: #{tpu_custom_call.1} parent=5 // pred_check
        _
      $region46: #{tpu_custom_call.1} parent=5 // pred_check_branch
        %308 = sbr.rel (%p305) target = $region48
      $region47: #{tpu_custom_call.1} parent=5 // pred_region
        %s309 = ssub.s32 %s19, 1
        %s310 = sand.u32 %s46, 1
        %s311 = scalar_lea.sflag [#allocation4], %s310
        %s312 = sand.u32 %s46, 1
        %s313 = smul.addr %s312, 8
        %s314 = scalar_lea.vmem [#allocation3], %s313
        // Predicated region
        $region49: #{tpu_custom_call.1} parent=47 // pred_check
          %p315 = pneg %p59
        $region50: #{tpu_custom_call.1} parent=47 // pred_check_branch
          %317 = sbr.rel (%p315) target = $region52
        $region51: #{tpu_custom_call.1} parent=47 // pred_region
          %319 = dma.done %s311, 128
        $region52: #{tpu_custom_call.1} parent=47 // pred_fallthru
          _
        // Predicated region
        $region53: #{tpu_custom_call.1} parent=47 // pred_check
          %p320 = pneg %p80
        $region54: #{tpu_custom_call.1} parent=47 // pred_check_branch
          %322 = sbr.rel (%p320) target = $region56
        $region55: #{tpu_custom_call.1} parent=47 // pred_region
          %324 = dma.done [#allocation7], 64
        $region56: #{tpu_custom_call.1} parent=47 // pred_fallthru
          _
        // Predicated region
        $region57: #{tpu_custom_call.1} parent=47 // pred_check
          %p325 = pneg %p122
        $region58: #{tpu_custom_call.1} parent=47 // pred_check_branch
          %327 = sbr.rel (%p325) target = $region60
        $region59: #{tpu_custom_call.1} parent=47 // pred_region
          %329 = dma.done [#allocation7], 2048
        $region60: #{tpu_custom_call.1} parent=47 // pred_fallthru
          _
        // Predicated region
        $region61: #{tpu_custom_call.1} parent=47 // pred_check
          %p330 = pneg %p164
        $region62: #{tpu_custom_call.1} parent=47 // pred_check_branch
          %332 = sbr.rel (%p330) target = $region64
        $region63: #{tpu_custom_call.1} parent=47 // pred_region
          %334 = dma.done [#allocation10], 2048
        $region64: #{tpu_custom_call.1} parent=47 // pred_fallthru
          _
        %s335 = sand.u32 %s46, 1
        %s336 = scalar_lea.sflag [#allocation4], %s335
        %s337 = sand.u32 %s46, 1
        %s338 = smul.addr %s337, 8
        %s339 = scalar_lea.vmem [#allocation3], %s338
        %p340 = pneg %p59
        %p341 = pneg %p56
        %p342 = pneg %p80
        %p343 = pneg %p77
        %p344 = pneg %p101
        %p345 = pneg %p98
        %p346 = pneg %p122
        %p347 = pneg %p119
        %p348 = pneg %p143
        %p349 = pneg %p140
        %p350 = pneg %p164
        %p351 = pneg %p161
        %p352 = pneg %p185
        %p353 = pneg %p182
        %p354 = pneg %p211
        %p355 = pneg %p208
        %s356 = smul.u32 2, %s28
        %p357 = scmp.eq.s32.totalorder %s29, 0
        // Predicated region
        $region65: #{tpu_custom_call.1} parent=47 // pred_check
          %p358 = pneg %p357
        $region66: #{tpu_custom_call.1} parent=47 // pred_check_branch
          %360 = sbr.rel (%p358) target = $region68
        $region67: #{tpu_custom_call.1} parent=47 // pred_region
          %vm361 = vcmask 25600
          %362 = vst.msk [vmem:[#allocation2] sm:$0x3] %vm361, 0.0
        $region68: #{tpu_custom_call.1} parent=47 // pred_fallthru
          _
        %v363 = vld [vmem:[%s314] sm:$0xf]
        %v364 = vld [vmem:[%s314 + $0x4] sm:$0xf]
        %v365 = vld [vmem:[#allocation2] sm:$0x3]
        %vm366 = vcmask 1043456
        %v367 = vsel %vm366, %v363, 0.0
        %368 = vadd.xlane.f32.xlu0 %v367
        %v369 = vpop.xlane.xlu0 %368
        %v370 = vsel %vm366, %v364, 0.0
        %371 = vadd.xlane.f32.xlu0 %v370
        %v372 = vpop.xlane.xlu0 %371
        %v375 = vlaneseq
        %v376 = vand.u32 %v375, 127
        %v377 = vperm.slane %v369, %v376
        %v378 = vperm.slane %v372, %v376
        %vm379 = vcmask 1041409
        %v380 = vsel %vm379, %v378, %v377
        %v382 = vadd.f32 %v365, %v380
        %vm383 = vcmask 25600
        %384 = vst.msk [vmem:[#allocation2] sm:$0x3] %vm383, %v382
        %p385 = scmp.eq.s32.totalorder %s29, 1
        // Predicated region
        $region69: #{tpu_custom_call.1} parent=47 // pred_check
          %p386 = pneg %p385
        $region70: #{tpu_custom_call.1} parent=47 // pred_check_branch
          %388 = sbr.rel (%p386) target = $region72
        $region71: #{tpu_custom_call.1} parent=47 // pred_region
          %v389 = vld [vmem:[#allocation2] sm:$0x3]
          %v390 = vld [vmem:[#allocation6] sm:$0xf]
          %v391 = vld [vmem:[%s2] sm:$0x1]
          %v393 = vperm.slane %v391, 0
          %vm395 = vcmask 31744
          %v397 = vsel %vm395, %v389, 0
          %v400 = vsel %vm366, %v390, 0
          %402 = vmatpush.msra.mxu0 0.0
          %403 = vmatpush.msra.mxu0 0.0
          %404 = vmatpush.msra.mxu0 0.0
          %405 = vmatpush.msra.mxu0 0.0
          %406 = vmatpush.msra.mxu0 0.0
          %407 = vmatpush.msra.mxu0 0.0
          %408 = vmatpush.msra.mxu0 0.0
          %409 = vmatpush.msra.mxu0 0.0
          %410 = vmatpush.msra.mxu0 0.0
          %411 = vmatpush.msra.mxu0 0.0
          %412 = vmatpush.msra.mxu0 0.0
          %413 = vmatpush.msra.mxu0 0.0
          %414 = vmatpush.msra.mxu0 0.0
          %415 = vmatpush.msra.mxu0 0.0
          %416 = vmatpush.msra.mxu0 0.0
          %417 = vmatpush.msra.mxu0 %v400
          %418 = vmatmul.f32.gmra.mxu0 %v397
          %v419 = vpop.f32.mrf.mxu0
          %v420 = vadd.f32 %v393, %v419
          %421 = vdwg.mxu0
          %v422 = vld [vmem:[#allocation8] sm:$0xff]
          %v423 = vld [vmem:[#allocation8 + $0x8] sm:$0xff]
          %v424 = vld [vmem:[#allocation8 + $0x10] sm:$0xff]
          %v425 = vld [vmem:[#allocation8 + $0x18] sm:$0xff]
          %v426 = vld [vmem:[#allocation8 + $0x20] sm:$0xff]
          %v427 = vld [vmem:[#allocation8 + $0x28] sm:$0xff]
          %v428 = vld [vmem:[#allocation8 + $0x30] sm:$0xff]
          %v429 = vld [vmem:[#allocation8 + $0x38] sm:$0xff]
          %v430 = vld [vmem:[#allocation8 + $0x40] sm:$0xff]
          %v431 = vld [vmem:[#allocation8 + $0x48] sm:$0xff]
          %v432 = vld [vmem:[#allocation8 + $0x50] sm:$0xff]
          %v433 = vld [vmem:[#allocation8 + $0x58] sm:$0xff]
          %v434 = vld [vmem:[#allocation8 + $0x60] sm:$0xff]
          %v435 = vld [vmem:[#allocation8 + $0x68] sm:$0xff]
          %v436 = vld [vmem:[#allocation8 + $0x70] sm:$0xff]
          %v437 = vld [vmem:[#allocation8 + $0x78] sm:$0xff]
          %v438 = vld [vmem:[%s4] sm:$0x1]
          %v440 = vperm.slane %v438, 0
          %442 = vmatpush.msra.mxu0 %v437
          %443 = vmatpush.msra.mxu0 %v436
          %444 = vmatpush.msra.mxu0 %v435
          %445 = vmatpush.msra.mxu0 %v434
          %446 = vmatpush.msra.mxu0 %v433
          %447 = vmatpush.msra.mxu0 %v432
          %448 = vmatpush.msra.mxu0 %v431
          %449 = vmatpush.msra.mxu0 %v430
          %450 = vmatpush.msra.mxu0 %v429
          %451 = vmatpush.msra.mxu0 %v428
          %452 = vmatpush.msra.mxu0 %v427
          %453 = vmatpush.msra.mxu0 %v426
          %454 = vmatpush.msra.mxu0 %v425
          %455 = vmatpush.msra.mxu0 %v424
          %456 = vmatpush.msra.mxu0 %v423
          %457 = vmatpush.msra.mxu0 %v422
          %458 = vmatmul.f32.gmra.mxu0 %v420
          %v459 = vpop.f32.mrf.mxu0
          %v460 = vadd.f32 %v440, %v459
          %461 = vdwg.mxu0
          %v462 = vxor.u32 %v460, 2147483648
          %v463 = vmul.f32 %v462, 1.442695
          %v464 = vpow.pop %v463
          %v465 = vadd.f32 %v464, 1.0
          %v466 = vrcp.pop %v465
          %v467 = vmul.f32 %v465, %v466
          %v468 = vsub.f32 1.0, %v467
          %v469 = vmul.f32 %v466, %v468
          %v470 = vadd.f32 %v466, %v469
          %vm471 = vweird.f32 %v465
          %vm472 = vweird.f32 %v466
          %vm473 = vmor %vm471, %vm472
          %v474 = vsel %vm473, %v466, %v470
          %v475 = vand.u32 2147483647, %v465
          %vm476 = vcmp.eq.f32.partialorder %v475, 8.507059e+37
          %v477 = vand.u32 %v465, 2147483648
          %v478 = vor.u32 1.1754944e-38, %v477
          %v479 = vsel %vm476, %v478, %v474
          %v480 = vmul.f32 1.0, %v479
          %v481 = vld [vmem:[#allocation9] sm:$0xff]
          %v482 = vld [vmem:[#allocation9 + $0x8] sm:$0xff]
          %v483 = vld [vmem:[#allocation9 + $0x10] sm:$0xff]
          %v484 = vld [vmem:[#allocation9 + $0x18] sm:$0xff]
          %v485 = vld [vmem:[#allocation9 + $0x20] sm:$0xff]
          %v486 = vld [vmem:[#allocation9 + $0x28] sm:$0xff]
          %v487 = vld [vmem:[#allocation9 + $0x30] sm:$0xff]
          %v488 = vld [vmem:[#allocation9 + $0x38] sm:$0xff]
          %v489 = vld [vmem:[#allocation9 + $0x40] sm:$0xff]
          %v490 = vld [vmem:[#allocation9 + $0x48] sm:$0xff]
          %v491 = vld [vmem:[#allocation9 + $0x50] sm:$0xff]
          %v492 = vld [vmem:[#allocation9 + $0x58] sm:$0xff]
          %v493 = vld [vmem:[#allocation9 + $0x60] sm:$0xff]
          %v494 = vld [vmem:[#allocation9 + $0x68] sm:$0xff]
          %v495 = vld [vmem:[#allocation9 + $0x70] sm:$0xff]
          %v496 = vld [vmem:[#allocation9 + $0x78] sm:$0xff]
          %v497 = vld [vmem:[%s6] sm:$0x1]
          %v499 = vperm.slane %v497, 0
          %501 = vmatpush.msra.mxu0 %v496
          %502 = vmatpush.msra.mxu0 %v495
          %503 = vmatpush.msra.mxu0 %v494
          %504 = vmatpush.msra.mxu0 %v493
          %505 = vmatpush.msra.mxu0 %v492
          %506 = vmatpush.msra.mxu0 %v491
          %507 = vmatpush.msra.mxu0 %v490
          %508 = vmatpush.msra.mxu0 %v489
          %509 = vmatpush.msra.mxu0 %v488
          %510 = vmatpush.msra.mxu0 %v487
          %511 = vmatpush.msra.mxu0 %v486
          %512 = vmatpush.msra.mxu0 %v485
          %513 = vmatpush.msra.mxu0 %v484
          %514 = vmatpush.msra.mxu0 %v483
          %515 = vmatpush.msra.mxu0 %v482
          %516 = vmatpush.msra.mxu0 %v481
          %517 = vmatmul.f32.gmra.mxu0 %v480
          %v518 = vpop.f32.mrf.mxu0
          %v519 = vadd.f32 %v499, %v518
          %520 = vdwg.mxu0
          %v521 = vxor.u32 %v519, 2147483648
          %v522 = vmul.f32 %v521, 1.442695
          %v523 = vpow.pop %v522
          %v524 = vadd.f32 %v523, 1.0
          %v525 = vrcp.pop %v524
          %v526 = vmul.f32 %v524, %v525
          %v527 = vsub.f32 1.0, %v526
          %v528 = vmul.f32 %v525, %v527
          %v529 = vadd.f32 %v525, %v528
          %vm530 = vweird.f32 %v524
          %vm531 = vweird.f32 %v525
          %vm532 = vmor %vm530, %vm531
          %v533 = vsel %vm532, %v525, %v529
          %v534 = vand.u32 2147483647, %v524
          %vm535 = vcmp.eq.f32.partialorder %v534, 8.507059e+37
          %v536 = vand.u32 %v524, 2147483648
          %v537 = vor.u32 1.1754944e-38, %v536
          %v538 = vsel %vm535, %v537, %v533
          %v539 = vmul.f32 1.0, %v538
          %540 = vst [vmem:[#allocation11] sm:$0x3] %v539
        $region72: #{tpu_custom_call.1} parent=47 // pred_fallthru
          _
        // Predicated region
        $region73: #{tpu_custom_call.1} parent=47 // pred_check
          %p541 = pneg %p208
        $region74: #{tpu_custom_call.1} parent=47 // pred_check_branch
          %543 = sbr.rel (%p541) target = $region76
        $region75: #{tpu_custom_call.1} parent=47 // pred_region
          %545 = vsyncadd [#allocation5], 0
          %s546 = smul.addr %s28, 2
          %s547 = scalar_lea.hbm %s7, %s546
          %s549 = sshll.u32 [#allocation11], 4
          %s550 = int_to_ptr.vmem [resolvable:$true] %s549
          %s551 = sshll.u32 %s547, 4
          %s552 = int_to_ptr.hbm [resolvable:$true] %s551
          %554 = dma.vmem_to_hbm [thread:$0]  %s550, 32, %s552, [#allocation5]
        $region76: #{tpu_custom_call.1} parent=47 // pred_fallthru
          _
        // Predicated region
        $region77: #{tpu_custom_call.1} parent=47 // pred_check
          %p555 = pneg %p208
        $region78: #{tpu_custom_call.1} parent=47 // pred_check_branch
          %557 = sbr.rel (%p555) target = $region80
        $region79: #{tpu_custom_call.1} parent=47 // pred_region
          %559 = dma.done [#allocation5], 32
        $region80: #{tpu_custom_call.1} parent=47 // pred_fallthru
          _
      $region48: #{tpu_custom_call.1} parent=5 // pred_fallthru
        _
      %p560 = scmp.le.s32.totalorder 2, %s19
      // Predicated region
      $region81: #{tpu_custom_call.1} parent=5 // pred_check
        %p561 = pneg %p560
      $region82: #{tpu_custom_call.1} parent=5 // pred_check_branch
        %563 = sbr.rel (%p561) target = $region84
      $region83: #{tpu_custom_call.1} parent=5 // pred_region
        %s564 = ssub.s32 %s19, 2
      $region84: #{tpu_custom_call.1} parent=5 // pred_fallthru
        _
    $region6: #{tpu_custom_call.1} parent=1 // loop_footer
      %s23 = sadd.s32 1, %s19
    $region7: #{tpu_custom_call.1} parent=1 // loop_footer_branch
      %18 = sbr.rel target = $region3
    $region8: #{tpu_custom_call.1} parent=1 // loop_exit
      _
    %565 = vsyncpa [#allocation4], 1
    %s566 = scalar_lea.sflag [#allocation4], 1
    %567 = vsyncpa %s566, 1
    %568 = vsyncpa [#allocation7], 1
    %569 = vsyncpa [#allocation10], 1
    %570 = vsyncpa [#allocation5], 1
    %s571 = scalar_lea.sflag [#allocation5], 1
    %572 = vsyncpa %s571, 1

</llo_original>
